<compile_context>
chip_gen: v5e
topology: v5e:2x2
jax: 0.10.0
libtpu: 0.0.40
codegen_flags: <defaults>
</compile_context>

<pallas_src>
import functools

import jax
import jax.numpy as jnp
import numpy as np
from jax.experimental import pallas as pl
from jax.experimental.pallas import tpu as pltpu

_EPS = 1e-8  # F.cosine_similarity default eps
_VMEM_TILE_BUDGET = 12 * 1024 * 1024   # per-step working-set target
_VMEM_LIMIT_BYTES = 40 * 1024 * 1024   # scoped VMEM limit (<= v7x's 64 MiB)


def _round_up(x, m):
    return (x + m - 1) // m * m


def _pick_edge_tile(E, D, out_cols, itemsize=4):
    """Largest row tile whose double-buffered src+dst+out rows fit the budget."""
    per_row = 2 * itemsize * (2 * D + out_cols)          # 2x for double buffering
    te = _VMEM_TILE_BUDGET // max(per_row, 1)
    te = min(te, 2048, _round_up(E, 8))
    te = max(8, (te // 8) * 8)
    return te


def _cost_estimate(op, E, D, out_cols, has_linear, has_bias, itemsize):
    combine_flops = {"dot": 2 * E * D, "cos": 6 * E * D + 4 * E,
                     "ele": E * D, "cat": 0}[op]
    flops = combine_flops
    bytes_accessed = 2 * E * D * itemsize + E * out_cols * itemsize
    if has_linear:
        in_dim = {"dot": 1, "cos": 1, "ele": D, "cat": 2 * D}[op]
        flops += 2 * E * in_dim * out_cols
        bytes_accessed += in_dim * out_cols * itemsize
        if has_bias:
            flops += E * out_cols
            bytes_accessed += out_cols * itemsize
    transcendentals = E if op == "cos" else 0
    return pl.CostEstimate(flops=int(flops), transcendentals=int(transcendentals),
                           bytes_accessed=int(bytes_accessed))


# ----------------------------------------------------------------------------
# Kernels: combine only (no linear head)
# ----------------------------------------------------------------------------
def _dot_cos_lane_kernel(src_ref, dst_ref, out_ref, *, op):
    """Per-tile dot/cos scores, written lane-dense as a (1, 1, TE) block."""
    a = src_ref[...].astype(jnp.float32)
    b = dst_ref[...].astype(jnp.float32)
    D = a.shape[-1]
    # Reduce over the feature (lane) dim with an MXU contraction so the result
    # lands with edges on the lane axis (no (TE, 1) masked-store column).
    ones = jnp.ones((8, D), jnp.float32)
    dn = (((1,), (1,)), ((), ()))  # contract feature dim of both operands
    s = jax.lax.dot_general(ones, a * b, dn,
                            preferred_element_type=jnp.float32)[0:1]  # (1, TE)
    if op == "cos":
        n1 = jax.lax.dot_general(ones, a * a, dn,
                                 preferred_element_type=jnp.float32)[0:1]
        n2 = jax.lax.dot_general(ones, b * b, dn,
                                 preferred_element_type=jnp.float32)[0:1]
        s = s * jax.lax.rsqrt(jnp.maximum(n1 * n2, _EPS * _EPS))
    out_ref[...] = s[None].astype(out_ref.dtype)  # (1, 1, TE) lane-dense store


def _ele_kernel(src_ref, dst_ref, out_ref):
    a = src_ref[...].astype(jnp.float32)
    b = dst_ref[...].astype(jnp.float32)
    out_ref[...] = (a * b).astype(out_ref.dtype)


def _cat_kernel(src_ref, dst_ref, out_ref):
    # Pure data movement; fastest when D is a multiple of 128 (aligned stores).
    D = src_ref.shape[-1]
    out_ref[:, :D] = src_ref[...].astype(out_ref.dtype)
    out_ref[:, D:] = dst_ref[...].astype(out_ref.dtype)


# ----------------------------------------------------------------------------
# Kernel: combine fused with the optional nn.Linear head
# Weights arrive pre-transposed (and pre-split for 'cat') from the wrapper.
# refs layout: (weight refs..., [bias_ref], out_ref)
# ----------------------------------------------------------------------------
def _combine_linear_kernel(src_ref, dst_ref, *refs, op, has_bias):
    out_ref = refs[-1]
    a = src_ref[...].astype(jnp.float32)
    b = dst_ref[...].astype(jnp.float32)

    if op in ("dot", "cos"):
        w_row = refs[0][...].astype(jnp.float32)          # (1, out_feats)
        s = jnp.sum(a * b, axis=-1, keepdims=True)        # (TE, 1)
        if op == "cos":
            n1 = jnp.sum(a * a, axis=-1, keepdims=True)
            n2 = jnp.sum(b * b, axis=-1, keepdims=True)
            s = s * jax.lax.rsqrt(jnp.maximum(n1 * n2, _EPS * _EPS))
        y = s * w_row                                     # broadcast, no K=1 matmul
    elif op == "ele":
        w = refs[0][...].astype(jnp.float32)              # (D, out_feats)
        y = jnp.dot(a * b, w, preferred_element_type=jnp.float32)
    else:  # 'cat' — split matmul instead of materializing the concat
        wa = refs[0][...].astype(jnp.float32)             # (D, out_feats)
        wb = refs[1][...].astype(jnp.float32)             # (D, out_feats)
        y = jnp.dot(a, wa, preferred_element_type=jnp.float32)
        y = y + jnp.dot(b, wb, preferred_element_type=jnp.float32)

    if has_bias:
        y = y + refs[-2][...].astype(jnp.float32)         # (1, out_feats)
    out_ref[...] = y.astype(out_ref.dtype)


# ----------------------------------------------------------------------------
# Wrapper
# ----------------------------------------------------------------------------
def edge_predictor(h_src, h_dst, op, weight=None, bias=None, *, edge_tile=None):
    """Pallas implementation of dgl.nn.EdgePredictor.forward."""
    assert op in ("dot", "cos", "ele", "cat")
    E, D = h_src.shape
    out_dtype = jnp.result_type(h_src.dtype, h_dst.dtype)
    comb_dim = {"dot": 1, "cos": 1, "ele": D, "cat": 2 * D}[op]
    out_cols = comb_dim if weight is None else int(weight.shape[0])

    TE = _pick_edge_tile(E, D, out_cols, np.dtype(out_dtype).itemsize)
    if edge_tile is not None:
        TE = max(8, (int(edge_tile) // 8) * 8)
        TE = min(TE, _round_up(E, 8))
    if weight is None and op in ("dot", "cos") and TE >= 128:
        TE = (TE // 128) * 128       # full-lane (unmasked) stores for the scores
    G = pl.cdiv(E, TE)

    edge_spec = pl.BlockSpec((TE, D), lambda i: (i, 0))
    cparams = pltpu.CompilerParams(
        dimension_semantics=("parallel",),     # shard edge tiles across TCs (v7x)
        vmem_limit_bytes=_VMEM_LIMIT_BYTES,
    )
    cost = _cost_estimate(op, E, D, out_cols, weight is not None, bias is not None,
                          np.dtype(out_dtype).itemsize)

    # ------------------------------------------------------------------ no head
    if weight is None:
        if op in ("dot", "cos"):
            out = pl.pallas_call(
                functools.partial(_dot_cos_lane_kernel, op=op),
                out_shape=jax.ShapeDtypeStruct((G, 1, TE), out_dtype),
                grid=(G,),
                in_specs=[edge_spec, edge_spec],
                out_specs=pl.BlockSpec((1, 1, TE), lambda i: (i, 0, 0)),
                compiler_params=cparams,
                cost_estimate=cost,
            )(h_src, h_dst)
            # (G, 1, TE) -> flat scores -> (E, 1): free row-major reshape + tiny slice.
            return out.reshape(G * TE)[:E].reshape(E, 1)

        kernel = _ele_kernel if op == "ele" else _cat_kernel
        return pl.pallas_call(
            kernel,
            out_shape=jax.ShapeDtypeStruct((E, comb_dim), out_dtype),
            grid=(G,),
            in_specs=[edge_spec, edge_spec],
            out_specs=pl.BlockSpec((TE, comb_dim), lambda i: (i, 0)),
            compiler_params=cparams,
            cost_estimate=cost,
        )(h_src, h_dst)

    # --------------------------------------------------------------- with head
    out_feats, in_dim = weight.shape
    out_dtype = jnp.result_type(out_dtype, weight.dtype)
    has_bias = bias is not None

    operands = [h_src, h_dst]
    in_specs = [edge_spec, edge_spec]
    full2d = lambda shape: pl.BlockSpec(shape, lambda i: (0, 0))

    if op in ("dot", "cos"):
        operands.append(weight.reshape(1, out_feats))           # == weight.T
        in_specs.append(full2d((1, out_feats)))
    elif op == "ele":
        operands.append(weight.T)                               # (D, out_feats)
        in_specs.append(full2d((D, out_feats)))
    else:  # 'cat': pre-split + pre-transpose the weight (hoisted out of the kernel)
        operands += [weight[:, :D].T, weight[:, D:].T]
        in_specs += [full2d((D, out_feats)), full2d((D, out_feats))]

    if has_bias:
        operands.append(bias.reshape(1, out_feats))
        in_specs.append(full2d((1, out_feats)))

    return pl.pallas_call(
        functools.partial(_combine_linear_kernel, op=op, has_bias=has_bias),
        out_shape=jax.ShapeDtypeStruct((E, out_feats), out_dtype),
        grid=(G,),
        in_specs=in_specs,
        out_specs=pl.BlockSpec((TE, out_feats), lambda i: (i, 0)),
        compiler_params=cparams,
        cost_estimate=cost,
    )(*operands)


# ----------------------------------------------------------------------------
# Pure-JAX reference (for correctness check)
# ----------------------------------------------------------------------------
def _reference(h_src, h_dst, op, weight=None, bias=None):
    if op == "dot":
        h = jnp.sum(h_src * h_dst, axis=-1, keepdims=True)
    elif op == "cos":
        w12 = jnp.sum(h_src * h_dst, axis=-1, keepdims=True)
        w1 = jnp.sum(h_src * h_src, axis=-1, keepdims=True)
        w2 = jnp.sum(h_dst * h_dst, axis=-1, keepdims=True)
        h = w12 / jnp.sqrt(jnp.maximum(w1 * w2, _EPS * _EPS))
    elif op == "ele":
        h = h_src * h_dst
    else:
        h = jnp.concatenate([h_src, h_dst], axis=-1)
    if weight is not None:
        h = h @ weight.T
        if bias is not None:
            h = h + bias
    return h


if __name__ == "__main__":
    E, D, OUT = 40, 128, 16   # edges, in_feats, out_feats (small, lane-aligned D)
    TILE = 16                 # forces a multi-tile grid with a ragged last tile

    key = jax.random.PRNGKey(0)
    k1, k2, k3, k4 = jax.random.split(key, 4)
    h_src = jax.random.normal(k1, (E, D), dtype=jnp.float32)
    h_dst = jax.random.normal(k2, (E, D), dtype=jnp.float32)

    expected = {"dot": 1, "cos": 1, "ele": D, "cat": 2 * D}
    ok = True
    for op in ("dot", "cos", "ele", "cat"):
        in_dim = {"dot": 1, "cos": 1, "ele": D, "cat": 2 * D}[op]
        w = jax.random.normal(k3, (OUT, in_dim), dtype=jnp.float32) * 0.1
        b = jax.random.normal(k4, (OUT,), dtype=jnp.float32) * 0.1

        for tile in (TILE, None):  # forced small multi-tile grid + auto-picked tile
            # Case A: combine only
            out = jax.block_until_ready(edge_predictor(h_src, h_dst, op, edge_tile=tile))
            ref = _reference(h_src, h_dst, op)
            ok &= out.shape == (E, expected[op])
            ok &= bool(np.allclose(np.asarray(out), np.asarray(ref), atol=1e-3, rtol=1e-3))

            # Case B: combine + linear head (with and without bias)
            for bias_arg in (b, None):
                out_l = jax.block_until_ready(
                    edge_predictor(h_src, h_dst, op, w, bias_arg, edge_tile=tile))
                ref_l = _reference(h_src, h_dst, op, w, bias_arg)
                ok &= out_l.shape == (E, OUT)
                ok &= bool(np.allclose(np.asarray(out_l), np.asarray(ref_l),
                                       atol=1e-3, rtol=1e-3))

    print("KERNEL_OK" if ok else "KERNEL_MISMATCH")
</pallas_src>

<mosaic_0001>
module attributes {stable_mosaic.version = 11 : i64} {
  func.func @_dot_cos_lane_kernel(%arg0: i32, %arg1: memref<16x128xf32, #tpu.memory_space<vmem>>, %arg2: memref<16x128xf32, #tpu.memory_space<vmem>>, %arg3: memref<1x1x16xf32, #tpu.memory_space<vmem>>) attributes {dimension_semantics = [#tpu.dimension_semantics<parallel>], iteration_bounds = array<i64: 3>, scalar_prefetch = 0 : i64, scratch_operands = 0 : i64, tpu.core_type = #tpu.core_type<tc>, window_params = [{transform_indices = @transform_0, window_bounds = array<i64: 16, 128>}, {transform_indices = @transform_1, window_bounds = array<i64: 16, 128>}, {transform_indices = @transform_2, window_bounds = array<i64: 1, 1, 16>}]} {
    %c0 = arith.constant 0 : index
    %c0_0 = arith.constant 0 : index
    %0 = vector.load %arg1[%c0, %c0_0] : memref<16x128xf32, #tpu.memory_space<vmem>>, vector<16x128xf32>
    %c0_1 = arith.constant 0 : index
    %c0_2 = arith.constant 0 : index
    %1 = vector.load %arg2[%c0_1, %c0_2] : memref<16x128xf32, #tpu.memory_space<vmem>>, vector<16x128xf32>
    %cst = arith.constant 1.000000e+00 : f32
    %2 = vector.broadcast %cst : f32 to vector<8x128xf32>
    %3 = arith.mulf %0, %1 : vector<16x128xf32>
    %cst_3 = arith.constant dense<0.000000e+00> : vector<8x16xf32>
    %4 = tpu.matmul %2, %3, %cst_3 {dimension_numbers = #tpu.dot_dimension_numbers<[1], [1], [0], [0], [0, 0, 1, 0], [], []>} : vector<8x128xf32>, vector<16x128xf32>, vector<8x16xf32> -> vector<8x16xf32>
    %5 = vector.extract_strided_slice %4 {offsets = [0, 0], sizes = [1, 16], strides = [1, 1]} : vector<8x16xf32> to vector<1x16xf32>
    %6 = vector.shape_cast %5 : vector<1x16xf32> to vector<1x1x16xf32>
    %c0_4 = arith.constant 0 : index
    %c0_5 = arith.constant 0 : index
    %c0_6 = arith.constant 0 : index
    %7 = vector.load %arg3[%c0_4, %c0_5, %c0_6] : memref<1x1x16xf32, #tpu.memory_space<vmem>>, vector<1x1x16xf32>
    tpu.vector_store %arg3[%c0_4, %c0_5, %c0_6], %6 {strides = array<i32>} : memref<1x1x16xf32, #tpu.memory_space<vmem>>, vector<1x1x16xf32>,
    return
  }
  func.func @transform_0(%arg0: i32) -> (i32, i32) {
    %c0_i32 = arith.constant 0 : i32
    %c0_i32_0 = arith.constant 0 : i32
    return %arg0, %c0_i32 : i32, i32
  }
  func.func @transform_1(%arg0: i32) -> (i32, i32) {
    %c0_i32 = arith.constant 0 : i32
    %c0_i32_0 = arith.constant 0 : i32
    return %arg0, %c0_i32 : i32, i32
  }
  func.func @transform_2(%arg0: i32) -> (i32, i32, i32) {
    %c0_i32 = arith.constant 0 : i32
    %c0_i32_0 = arith.constant 0 : i32
    %c0_i32_1 = arith.constant 0 : i32
    return %arg0, %c0_i32, %c0_i32_0 : i32, i32, i32
  }
}

</mosaic_0001>

<llo_original>
// kernel: tpu_custom_call.1
$region0: #{tpu_custom_call.1}
  #allocation0 [shape = 'u32[]', space=smem, size = 0x4, offset = 0x4, fixed_abs, tag = 'smem constant byte address 0x4 - core index']
  #allocation1 [shape = 'u32[72,128]{1,0:T(1,128)}', space=vmem, size = 0x9000, scoped, tag = 'internal scratch']
  %s0 = inlined_call_operand.hbm [shape: f32[40,128], index: 0, kind: input, shape index: {}]
  %s1 = inlined_call_operand.hbm [shape: f32[40,128], index: 1, kind: input, shape index: {}]
  %s2 = inlined_call_operand.hbm [shape: f32[3,1,16], index: 2, kind: output, shape index: {}]
  %s3 = sld [smem:[#allocation0]]
  $region49: #{tpu_custom_call.1} parent=0
    _
  %s5 = ssub.s32 1, %s3
  %s6 = scalar_select 0, %s5, %s3
  $region1: #{tpu_custom_call.1} parent=0
    #allocation2 [shape = 'u8[16384]{0}', space=vmem, size = 0x4000, scoped, tag = 'input window, operand 0']
    #allocation3 [shape = 's32[2]{0}', space=sflag, size = 0x8, scoped, tag = 'scoped memory for tpu_custom_call.1']
    #allocation4 [shape = 's32[2]{0}', space=sflag, size = 0x8, scoped, tag = 'scoped memory for tpu_custom_call.1']
    #allocation5 [shape = 'u8[16384]{0}', space=vmem, size = 0x4000, scoped, tag = 'input window, operand 1']
    #allocation6 [shape = 's32[2]{0}', space=sflag, size = 0x8, scoped, tag = 'scoped memory for tpu_custom_call.1']
    #allocation7 [shape = 'u8[1024]{0}', space=vmem, size = 0x400, scoped, tag = 'output window, operand 0']
    %7 = vsyncpa [#allocation3], 0
    %s8 = scalar_lea.sflag [#allocation3], 1
    %9 = vsyncpa %s8, 0
    %10 = vsyncpa [#allocation6], 0
    %s11 = scalar_lea.sflag [#allocation6], 1
    %12 = vsyncpa %s11, 0
    %13 = vsyncpa [#allocation4], 0
    %s14 = scalar_lea.sflag [#allocation4], 1
    %15 = vsyncpa %s14, 0
    loop: start=0, step=1, limit=5
    $region2: #{tpu_custom_call.1} parent=1 // loop_pre_header
      _
    $region3: #{tpu_custom_call.1} parent=1 // loop_header
      %s17 = sphi 0, %s21
      %p18 = scmp.ge.s32.totalorder %s17, 5
      %s27 = sphi 0, %s29
      %s30 = sphi 0, %s27
      %s31 = sphi 0, %s30
      %s47 = sphi 0, %s31
      %s53 = sphi 0, %s55
      %s56 = sphi 0, %s53
      %s57 = sphi 0, %s56
      %s73 = sphi 0, %s57
      %s79 = sphi 0, %s81
      %s82 = sphi 0, %s79
      %s83 = sphi 0, %s82
      %s99 = sphi 0, %s83
    $region4: #{tpu_custom_call.1} parent=1 // loop_header_branch
      %20 = sbr.rel (%p18) target = $region8
    $region5: #{tpu_custom_call.1} parent=1 // loop_body
      %s22 = ssub.s32 %s17, 1
      %s23 = ssub.s32 %s17, 2
      %s24 = sadd.s32 %s17, 1
      %s25 = ssub.s32 %s17, %s24
      %p26 = scmp.eq.s32.totalorder %s25, 0
      %s28 = sadd.s32 %s27, 1
      %s29 = scalar_select %p26, %s27, %s28
      %p32 = pneg %p26
      %p33 = scmp.eq.s32.totalorder %s17, 2
      %p34 = por %p32, %p33
      %p35 = scmp.ne.s32.totalorder %s27, %s30
      %p36 = scmp.eq.s32.totalorder %s17, 0
      %p37 = por %p35, %p36
      %p38 = scmp.ne.s32.totalorder %s27, %s30
      %p39 = scmp.eq.s32.totalorder %s22, 2
      %p40 = por %p38, %p39
      %p41 = scmp.ne.s32.totalorder %s30, %s31
      %p42 = scmp.eq.s32.totalorder %s22, 0
      %p43 = por %p41, %p42
      %p44 = scmp.ne.s32.totalorder %s30, %s31
      %p45 = scmp.eq.s32.totalorder %s23, 2
      %p46 = por %p44, %p45
      %p48 = scmp.ne.s32.totalorder %s31, %s47
      %p49 = scmp.eq.s32.totalorder %s23, 0
      %p50 = por %p48, %p49
      %s51 = ssub.s32 %s17, %s24
      %p52 = scmp.eq.s32.totalorder %s51, 0
      %s54 = sadd.s32 %s53, 1
      %s55 = scalar_select %p52, %s53, %s54
      %p58 = pneg %p52
      %p59 = scmp.eq.s32.totalorder %s17, 2
      %p60 = por %p58, %p59
      %p61 = scmp.ne.s32.totalorder %s53, %s56
      %p62 = scmp.eq.s32.totalorder %s17, 0
      %p63 = por %p61, %p62
      %p64 = scmp.ne.s32.totalorder %s53, %s56
      %p65 = scmp.eq.s32.totalorder %s22, 2
      %p66 = por %p64, %p65
      %p67 = scmp.ne.s32.totalorder %s56, %s57
      %p68 = scmp.eq.s32.totalorder %s22, 0
      %p69 = por %p67, %p68
      %p70 = scmp.ne.s32.totalorder %s56, %s57
      %p71 = scmp.eq.s32.totalorder %s23, 2
      %p72 = por %p70, %p71
      %p74 = scmp.ne.s32.totalorder %s57, %s73
      %p75 = scmp.eq.s32.totalorder %s23, 0
      %p76 = por %p74, %p75
      %s77 = ssub.s32 %s17, %s24
      %p78 = scmp.eq.s32.totalorder %s77, 0
      %s80 = sadd.s32 %s79, 1
      %s81 = scalar_select %p78, %s79, %s80
      %p84 = pneg %p78
      %p85 = scmp.eq.s32.totalorder %s17, 2
      %p86 = por %p84, %p85
      %p87 = scmp.ne.s32.totalorder %s79, %s82
      %p88 = scmp.eq.s32.totalorder %s17, 0
      %p89 = por %p87, %p88
      %p90 = scmp.ne.s32.totalorder %s79, %s82
      %p91 = scmp.eq.s32.totalorder %s22, 2
      %p92 = por %p90, %p91
      %p93 = scmp.ne.s32.totalorder %s82, %s83
      %p94 = scmp.eq.s32.totalorder %s22, 0
      %p95 = por %p93, %p94
      %p96 = scmp.ne.s32.totalorder %s82, %s83
      %p97 = scmp.eq.s32.totalorder %s23, 2
      %p98 = por %p96, %p97
      %p100 = scmp.ne.s32.totalorder %s83, %s99
      %p101 = scmp.eq.s32.totalorder %s23, 0
      %p102 = por %p100, %p101
      %p103 = scmp.le.s32.totalorder 1, %s17
      %p104 = scmp.lt.s32.totalorder %s17, 4
      %p105 = pnand %p103, %p104
      %p106 = pneg %p105
      // Predicated region
      $region9: #{tpu_custom_call.1} parent=5 // pred_check
        _
      $region10: #{tpu_custom_call.1} parent=5 // pred_check_branch
        %108 = sbr.rel (%p105) target = $region12
      $region11: #{tpu_custom_call.1} parent=5 // pred_region
        %s109 = ssub.s32 %s17, 1
      $region12: #{tpu_custom_call.1} parent=5 // pred_fallthru
        _
      %p110 = scmp.lt.s32.totalorder %s17, 3
      // Predicated region
      $region13: #{tpu_custom_call.1} parent=5 // pred_check
        %p111 = pneg %p110
      $region14: #{tpu_custom_call.1} parent=5 // pred_check_branch
        %113 = sbr.rel (%p111) target = $region16
      $region15: #{tpu_custom_call.1} parent=5 // pred_region
        // Predicated region
        $region17: #{tpu_custom_call.1} parent=15 // pred_check
          %p114 = pneg %p37
        $region18: #{tpu_custom_call.1} parent=15 // pred_check_branch
          %116 = sbr.rel (%p114) target = $region20
        $region19: #{tpu_custom_call.1} parent=15 // pred_region
          %s117 = sand.u32 %s27, 1
          %s118 = scalar_lea.sflag [#allocation3], %s117
          %s119 = sand.u32 %s27, 1
          %s120 = smul.addr %s119, 16
          %s121 = scalar_lea.vmem [#allocation2], %s120
          %s122 = smul.u32 2, %s17
          %s123 = ssub.s32 5, %s122
          %p124 = scmp.lt.s32.totalorder %s123, 2
          %s125 = scalar_select %p124, %s123, 2
          %s126 = smul.u32 8, %s125
          %s127 = ssub.s32 16, %s126
          %s128 = sshll.u32 %s127, 4
          %129 = vsyncadd %s118, %s128
          %p130 = scmp.ne.s32.totalorder 0, %s126
          %s131 = smul.addr %s122, 8
          %s132 = scalar_lea.hbm %s0, %s131
          %s133 = smul.u32 8, %s125
          %s134 = sshll.u32 %s132, 4
          %s135 = int_to_ptr.hbm [resolvable:$true] %s134
          %s136 = sshll.u32 %s121, 4
          %s137 = int_to_ptr.vmem [resolvable:$true] %s136
          %s138 = sshll.u32 %s133, 4
          %142 = dma.hbm_to_vmem [thread:$0]  (%p130), %s135, %s138, %s137, %s118, 128, 128, 8
        $region20: #{tpu_custom_call.1} parent=15 // pred_fallthru
          _
        // Predicated region
        $region21: #{tpu_custom_call.1} parent=15 // pred_check
          %p143 = pneg %p63
        $region22: #{tpu_custom_call.1} parent=15 // pred_check_branch
          %145 = sbr.rel (%p143) target = $region24
        $region23: #{tpu_custom_call.1} parent=15 // pred_region
          %s146 = sand.u32 %s53, 1
          %s147 = scalar_lea.sflag [#allocation6], %s146
          %s148 = sand.u32 %s53, 1
          %s149 = smul.addr %s148, 16
          %s150 = scalar_lea.vmem [#allocation5], %s149
          %s151 = smul.u32 2, %s17
          %s152 = ssub.s32 5, %s151
          %p153 = scmp.lt.s32.totalorder %s152, 2
          %s154 = scalar_select %p153, %s152, 2
          %s155 = smul.u32 8, %s154
          %s156 = ssub.s32 16, %s155
          %s157 = sshll.u32 %s156, 4
          %158 = vsyncadd %s147, %s157
          %p159 = scmp.ne.s32.totalorder 0, %s155
          %s160 = smul.addr %s151, 8
          %s161 = scalar_lea.hbm %s1, %s160
          %s162 = smul.u32 8, %s154
          %s163 = sshll.u32 %s161, 4
          %s164 = int_to_ptr.hbm [resolvable:$true] %s163
          %s165 = sshll.u32 %s150, 4
          %s166 = int_to_ptr.vmem [resolvable:$true] %s165
          %s167 = sshll.u32 %s162, 4
          %171 = dma.hbm_to_vmem [thread:$0]  (%p159), %s164, %s167, %s166, %s147, 128, 128, 8
        $region24: #{tpu_custom_call.1} parent=15 // pred_fallthru
          _
      $region16: #{tpu_custom_call.1} parent=5 // pred_fallthru
        _
      %p172 = scmp.le.s32.totalorder 1, %s17
      %p173 = scmp.lt.s32.totalorder %s17, 4
      %p174 = pnand %p172, %p173
      %p175 = pneg %p174
      // Predicated region
      $region25: #{tpu_custom_call.1} parent=5 // pred_check
        _
      $region26: #{tpu_custom_call.1} parent=5 // pred_check_branch
        %177 = sbr.rel (%p174) target = $region28
      $region27: #{tpu_custom_call.1} parent=5 // pred_region
        %s178 = ssub.s32 %s17, 1
        %s179 = sand.u32 %s30, 1
        %s180 = scalar_lea.sflag [#allocation3], %s179
        %s181 = sand.u32 %s30, 1
        %s182 = smul.addr %s181, 16
        %s183 = scalar_lea.vmem [#allocation2], %s182
        // Predicated region
        $region29: #{tpu_custom_call.1} parent=27 // pred_check
          %p184 = pneg %p43
        $region30: #{tpu_custom_call.1} parent=27 // pred_check_branch
          %186 = sbr.rel (%p184) target = $region32
        $region31: #{tpu_custom_call.1} parent=27 // pred_region
          %188 = dma.done %s180, 256
        $region32: #{tpu_custom_call.1} parent=27 // pred_fallthru
          _
        %s189 = sand.u32 %s56, 1
        %s190 = scalar_lea.sflag [#allocation6], %s189
        %s191 = sand.u32 %s56, 1
        %s192 = smul.addr %s191, 16
        %s193 = scalar_lea.vmem [#allocation5], %s192
        // Predicated region
        $region33: #{tpu_custom_call.1} parent=27 // pred_check
          %p194 = pneg %p69
        $region34: #{tpu_custom_call.1} parent=27 // pred_check_branch
          %196 = sbr.rel (%p194) target = $region36
        $region35: #{tpu_custom_call.1} parent=27 // pred_region
          %198 = dma.done %s190, 256
        $region36: #{tpu_custom_call.1} parent=27 // pred_fallthru
          _
        %s199 = sand.u32 %s30, 1
        %s200 = scalar_lea.sflag [#allocation3], %s199
        %s201 = sand.u32 %s30, 1
        %s202 = smul.addr %s201, 16
        %s203 = scalar_lea.vmem [#allocation2], %s202
        %p204 = pneg %p43
        %p205 = pneg %p40
        %s206 = sand.u32 %s56, 1
        %s207 = scalar_lea.sflag [#allocation6], %s206
        %s208 = sand.u32 %s56, 1
        %s209 = smul.addr %s208, 16
        %s210 = scalar_lea.vmem [#allocation5], %s209
        %p211 = pneg %p69
        %p212 = pneg %p66
        %p213 = pneg %p95
        %p214 = pneg %p92
        %s215 = sand.u32 %s82, 1
        %s216 = scalar_lea.sflag [#allocation4], %s215
        %s217 = sand.u32 %s82, 1
        %s218 = scalar_lea.vmem [#allocation7], %s217
        %s219 = smul.u32 2, %s22
        %s220 = ssub.s32 5, %s219
        %p221 = scmp.lt.s32.totalorder %s220, 2
        %s222 = scalar_select %p221, %s220, 2
        %s223 = smul.u32 8, %s222
        %s224 = smul.u32 2, %s22
        %s225 = ssub.s32 5, %s224
        %p226 = scmp.lt.s32.totalorder %s225, 2
        %s227 = scalar_select %p226, %s225, 2
        %s228 = smul.u32 8, %s227
        %v229 = vld [vmem:[%s183] sm:$0xff]
        %v230 = vld [vmem:[%s183 + $0x8] sm:$0xff]
        %v231 = vld [vmem:[%s193] sm:$0xff]
        %v232 = vld [vmem:[%s193 + $0x8] sm:$0xff]
        %v233 = vmul.f32 %v229, %v231
        %v234 = vmul.f32 %v230, %v232
        %235 = vmatpush.xpose.msra.mxu0 0.0
        %236 = vmatpush.xpose.msra.mxu0 0.0
        %237 = vmatpush.xpose.msra.mxu0 0.0
        %238 = vmatpush.xpose.msra.mxu0 0.0
        %239 = vmatpush.xpose.msra.mxu0 0.0
        %240 = vmatpush.xpose.msra.mxu0 0.0
        %241 = vmatpush.xpose.msra.mxu0 0.0
        %242 = vmatpush.xpose.msra.mxu0 0.0
        %243 = vmatpush.xpose.msra.mxu0 0.0
        %244 = vmatpush.xpose.msra.mxu0 0.0
        %245 = vmatpush.xpose.msra.mxu0 0.0
        %246 = vmatpush.xpose.msra.mxu0 0.0
        %247 = vmatpush.xpose.msra.mxu0 0.0
        %248 = vmatpush.xpose.msra.mxu0 0.0
        %249 = vmatpush.xpose.msra.mxu0 %v234
        %250 = vmatpush.xpose.msra.mxu0 %v233
        %251 = vmatmul.f32.gmra.mxu0 1.0
        %v252 = vpop.f32.mrf.mxu0
        %v253 = vadd.f32 0.0, %v252
        %254 = vdwg.mxu0
        %vm255 = vcmask 122880
        %256 = vst.msk [vmem:[%s218] sm:$0x1] %vm255, %v253
        %s257 = sand.u32 %s82, 1
        %s258 = scalar_lea.sflag [#allocation4], %s257
        %s259 = sand.u32 %s82, 1
        %s260 = scalar_lea.vmem [#allocation7], %s259
        // Predicated region
        $region37: #{tpu_custom_call.1} parent=27 // pred_check
          %p261 = pneg %p92
        $region38: #{tpu_custom_call.1} parent=27 // pred_check_branch
          %263 = sbr.rel (%p261) target = $region40
        $region39: #{tpu_custom_call.1} parent=27 // pred_region
          %265 = vsyncadd %s258, 0
          %s266 = scalar_lea.hbm %s2, %s22
          %s268 = sshll.u32 %s260, 4
          %s269 = int_to_ptr.vmem [resolvable:$true] %s268
          %s270 = sshll.u32 %s266, 4
          %s271 = int_to_ptr.hbm [resolvable:$true] %s270
          %273 = dma.vmem_to_hbm [thread:$0]  %s269, 16, %s271, %s258
        $region40: #{tpu_custom_call.1} parent=27 // pred_fallthru
          _
      $region28: #{tpu_custom_call.1} parent=5 // pred_fallthru
        _
      %p274 = scmp.le.s32.totalorder 2, %s17
      // Predicated region
      $region41: #{tpu_custom_call.1} parent=5 // pred_check
        %p275 = pneg %p274
      $region42: #{tpu_custom_call.1} parent=5 // pred_check_branch
        %277 = sbr.rel (%p275) target = $region44
      $region43: #{tpu_custom_call.1} parent=5 // pred_region
        %s278 = ssub.s32 %s17, 2
        // Predicated region
        $region45: #{tpu_custom_call.1} parent=43 // pred_check
          %p279 = pneg %p98
        $region46: #{tpu_custom_call.1} parent=43 // pred_check_branch
          %281 = sbr.rel (%p279) target = $region48
        $region47: #{tpu_custom_call.1} parent=43 // pred_region
          %s282 = sand.u32 %s83, 1
          %s283 = scalar_lea.sflag [#allocation4], %s282
          %s284 = sand.u32 %s83, 1
          %s285 = scalar_lea.vmem [#allocation7], %s284
          %287 = dma.done %s283, 16
        $region48: #{tpu_custom_call.1} parent=43 // pred_fallthru
          _
      $region44: #{tpu_custom_call.1} parent=5 // pred_fallthru
        _
    $region6: #{tpu_custom_call.1} parent=1 // loop_footer
      %s21 = sadd.s32 1, %s17
    $region7: #{tpu_custom_call.1} parent=1 // loop_footer_branch
      %16 = sbr.rel target = $region3
    $region8: #{tpu_custom_call.1} parent=1 // loop_exit
      _
    %288 = vsyncpa [#allocation3], 1
    %s289 = scalar_lea.sflag [#allocation3], 1
    %290 = vsyncpa %s289, 1
    %291 = vsyncpa [#allocation6], 1
    %s292 = scalar_lea.sflag [#allocation6], 1
    %293 = vsyncpa %s292, 1
    %294 = vsyncpa [#allocation4], 1
    %s295 = scalar_lea.sflag [#allocation4], 1
    %296 = vsyncpa %s295, 1

</llo_original>
